<compile_context>
chip_gen: v6e
topology: v6e:2x2x1
jax: 0.10.0
libtpu: 0.0.40
codegen_flags: <defaults>
</compile_context>

<pallas_src>
import functools

import numpy as np
import jax
import jax.numpy as jnp
from jax import lax
from jax.experimental import pallas as pl
from jax.experimental.pallas import tpu as pltpu

# ----------------------------------------------------------------------------
# Config constants (mirrors config_wideband_yolo.py style constants).
# ----------------------------------------------------------------------------
S = 16                       # number of frequency cells
B = 2                        # boxes per cell
NUM_CLASSES = 6
DEPTH = 1 + 1 + NUM_CLASSES  # x, conf, classes -> 8 rows (maps to sublanes)
LAMBDA_COORD = 5.0
LAMBDA_NOOBJ = 0.5
LAMBDA_CLASS = 1.0
USE_SIMILARITY_MATRIX = True
MODULATION_CLASSES = ["bpsk", "qpsk", "8psk", "16qam", "64qam", "fm"]
SIMILARITY_DICT = {
    ("bpsk", "qpsk"): 0.8,
    ("qpsk", "8psk"): 0.7,
    ("16qam", "64qam"): 0.9,
    ("bpsk", "8psk"): 0.6,
}

LANE = 128           # TPU lane width
CHUNK_LANES = 512    # inner sub-chunk width (bounds vreg pressure)
MAX_TILE_N = 32768   # 8 x 32768 f32 = 1 MiB / input / buffer  (4 MiB total, VMEM-safe)


def build_similarity_matrix() -> np.ndarray:
    # Static config glue (pure Python double loop) done host-side once.
    sim = np.ones((NUM_CLASSES, NUM_CLASSES), dtype=np.float32)
    for i, mod1 in enumerate(MODULATION_CLASSES):
        for j, mod2 in enumerate(MODULATION_CLASSES):
            if mod1 == mod2:
                sim[i, j] = 1.0
            elif (mod1, mod2) in SIMILARITY_DICT:
                sim[i, j] = SIMILARITY_DICT[(mod1, mod2)]
            elif (mod2, mod1) in SIMILARITY_DICT:
                sim[i, j] = SIMILARITY_DICT[(mod2, mod1)]
            else:
                sim[i, j] = 1.0
    return sim


def _round_up(x: int, m: int) -> int:
    return ((x + m - 1) // m) * m


# ----------------------------------------------------------------------------
# Pallas kernel: one (DEPTH, tile_n) lane-major block per grid step; inner
# fori_loop over `chunk`-lane sub-chunks accumulates per-lane partials into a
# persistent VMEM accumulator; one cross-lane reduce + SMEM write at the end.
# ----------------------------------------------------------------------------
def _yolo_loss_kernel(pred_ref, tgt_ref, out_ref, acc_ref, *,
                      corr_terms, n_chunks, chunk):
    step = pl.program_id(0)

    @pl.when(step == 0)
    def _():
        acc_ref[...] = jnp.zeros_like(acc_ref)

    def chunk_body(ci, carry):
        c0 = pl.multiple_of(ci * chunk, chunk)
        sl = pl.ds(c0, chunk)

        diff = pred_ref[:, sl] - tgt_ref[:, sl]            # (DEPTH, chunk)
        sq = diff * diff                                   # (DEPTH, chunk)

        x_sq = sq[0:1, :]                                  # (x_pred - x_tgt)^2
        conf_pred = pred_ref[1:2, sl]
        conf_tgt = tgt_ref[1:2, sl]

        obj = (conf_tgt > 0.0).astype(jnp.float32)         # (1, chunk)
        # iou_1d = 1 - |dx| may go negative; intentionally matches the PyTorch ref.
        iou_1d = 1.0 - jnp.abs(diff[0:1, :])
        conf_err = conf_pred - iou_1d
        conf_obj = conf_err * conf_err
        noobj_term = LAMBDA_NOOBJ * (1.0 - obj) * (conf_pred * conf_pred)

        # Class term:  sum_c sim[argmax(class_tgt), c] * dcls_c^2
        #   == sum_c dcls_c^2 + sum_{(k,c): sim!=1} (sim[k,c]-1)*class_tgt_k*dcls_c^2
        # for one-hot class targets (standard YOLO labels).  All-zero "no object"
        # class rows are masked out by obj anyway.
        cls = jnp.sum(sq[2:DEPTH, :], axis=0, keepdims=True)
        for (k, c, delta) in corr_terms:
            cls = cls + delta * (tgt_ref[2 + k:3 + k, sl] * sq[2 + c:3 + c, :])

        per_lane = (obj * (LAMBDA_COORD * x_sq + conf_obj + LAMBDA_CLASS * cls)
                    + noobj_term)                          # (1, chunk)
        acc_ref[...] += per_lane
        return carry

    lax.fori_loop(0, n_chunks, chunk_body, 0)

    @pl.when(step == pl.num_programs(0) - 1)
    def _():
        out_ref[0, 0] = jnp.sum(acc_ref[...])


def wideband_yolo_loss(pred, target):
    """pred: (batch, S, B*(2+NUM_CLASSES)); target: (batch, S, B, 2+NUM_CLASSES)."""
    batch_size = pred.shape[0]
    s_cells = pred.shape[1]
    n_rows = batch_size * s_cells * B

    # One contiguous slab per tensor, flipped lane-major: (DEPTH, N).
    pred_t = pred.reshape(n_rows, DEPTH).T
    tgt_t = target.reshape(n_rows, DEPTH).T

    # Tile / chunk selection: tile is a multiple of the inner chunk, chunk is a
    # multiple of the 128-lane width.  Zero padding contributes exactly zero loss
    # (conf_tgt == 0 -> noobj branch, conf_pred == 0 -> 0), so padding is safe.
    n128 = _round_up(n_rows, LANE)
    if n128 <= CHUNK_LANES:
        tile_n, chunk = n128, n128
    else:
        tile_n = min(MAX_TILE_N, _round_up(n128, CHUNK_LANES))
        chunk = CHUNK_LANES
    padded_n = _round_up(n_rows, tile_n)
    if padded_n != n_rows:
        pad = padded_n - n_rows
        pred_t = jnp.pad(pred_t, ((0, 0), (0, pad)))
        tgt_t = jnp.pad(tgt_t, ((0, 0), (0, pad)))

    # Fold the similarity matrix into sparse scalar correction terms (trace time).
    # NOTE: equivalent to the argmax-based reference only for one-hot class
    # targets, which is the YOLO label format.
    if USE_SIMILARITY_MATRIX:
        sim = build_similarity_matrix()
        corr_terms = tuple(
            (k, c, float(sim[k, c]) - 1.0)
            for k in range(NUM_CLASSES) for c in range(NUM_CLASSES)
            if float(sim[k, c]) != 1.0)
    else:
        corr_terms = ()

    kernel = functools.partial(_yolo_loss_kernel, corr_terms=corr_terms,
                               n_chunks=tile_n // chunk, chunk=chunk)

    out = pl.pallas_call(
        kernel,
        out_shape=jax.ShapeDtypeStruct((1, 1), jnp.float32),
        grid=(padded_n // tile_n,),
        in_specs=[pl.BlockSpec((DEPTH, tile_n), lambda i: (0, i)),
                  pl.BlockSpec((DEPTH, tile_n), lambda i: (0, i))],
        out_specs=pl.BlockSpec(memory_space=pltpu.MemorySpace.SMEM),
        scratch_shapes=[pltpu.VMEM((1, chunk), jnp.float32)],
        compiler_params=pltpu.CompilerParams(
            dimension_semantics=("arbitrary",)),
        cost_estimate=pl.CostEstimate(
            flops=60 * padded_n,
            transcendentals=0,
            bytes_accessed=2 * DEPTH * padded_n * 4 + 4),
    )(pred_t, tgt_t)

    # Batch-size scaling kept in the wrapper so the kernel is batch-size agnostic.
    return out[0, 0] / batch_size


# ----------------------------------------------------------------------------
# Pure-JAX reference (mirrors the PyTorch forward) for a sanity check.
# ----------------------------------------------------------------------------
def wideband_yolo_loss_ref(pred, target, sim_matrix):
    batch_size = pred.shape[0]
    pred = pred.reshape(batch_size, pred.shape[1], B, DEPTH)
    x_pred, conf_pred, class_pred = pred[..., 0], pred[..., 1], pred[..., 2:]
    x_tgt, conf_tgt, class_tgt = target[..., 0], target[..., 1], target[..., 2:]
    obj = (conf_tgt > 0).astype(jnp.float32)
    noobj = 1.0 - obj
    coord = LAMBDA_COORD * jnp.sum(obj * (x_pred - x_tgt) ** 2)
    iou_1d = 1.0 - jnp.abs(x_pred - x_tgt)
    conf_o = jnp.sum(obj * (conf_pred - iou_1d) ** 2)
    conf_n = LAMBDA_NOOBJ * jnp.sum(noobj * conf_pred ** 2)
    if USE_SIMILARITY_MATRIX:
        idx = jnp.argmax(class_tgt, axis=-1)
        w = sim_matrix[idx]
        cls = LAMBDA_CLASS * jnp.sum(obj[..., None] * w * (class_pred - class_tgt) ** 2)
    else:
        cls = LAMBDA_CLASS * jnp.sum(obj[..., None] * (class_pred - class_tgt) ** 2)
    return (coord + conf_o + conf_n + cls) / batch_size


if __name__ == "__main__":
    key = jax.random.PRNGKey(0)
    k1, k2, k3, k4 = jax.random.split(key, 4)

    batch = 2

    # Predictions: raw network output shape (batch, S, B*(2+NUM_CLASSES)).
    pred = jax.random.normal(k1, (batch, S, B * DEPTH), dtype=jnp.float32)

    # Targets: (batch, S, B, 2+NUM_CLASSES) with ~half the boxes "objects",
    # one-hot class labels (standard YOLO target format).
    x_t = jax.random.uniform(k2, (batch, S, B, 1), dtype=jnp.float32)
    conf_t = (jax.random.uniform(k3, (batch, S, B, 1)) > 0.5).astype(jnp.float32)
    cls_idx = jax.random.randint(k4, (batch, S, B), 0, NUM_CLASSES)
    cls_t = jax.nn.one_hot(cls_idx, NUM_CLASSES, dtype=jnp.float32)
    target = jnp.concatenate([x_t, conf_t, cls_t], axis=-1)

    sim_matrix = jnp.asarray(build_similarity_matrix())

    loss = jax.block_until_ready(wideband_yolo_loss(pred, target))
    loss_ref = jax.block_until_ready(wideband_yolo_loss_ref(pred, target, sim_matrix))

    assert np.isfinite(float(loss))
    np.testing.assert_allclose(float(loss), float(loss_ref), rtol=1e-5, atol=1e-5)
    print("KERNEL_OK")
</pallas_src>

<mosaic_0001>
module attributes {stable_mosaic.version = 11 : i64} {
  func.func @_yolo_loss_kernel(%arg0: i32, %arg1: memref<8x128xf32, #tpu.memory_space<vmem>>, %arg2: memref<8x128xf32, #tpu.memory_space<vmem>>, %arg3: memref<1x1xf32, #tpu.memory_space<smem>>, %arg4: memref<1x128xf32, #tpu.memory_space<vmem>>) attributes {dimension_semantics = [#tpu.dimension_semantics<arbitrary>], iteration_bounds = array<i64: 1>, scalar_prefetch = 0 : i64, scratch_operands = 1 : i64, tpu.core_type = #tpu.core_type<tc>, window_params = [{transform_indices = @transform_0, window_bounds = array<i64: 8, 128>}, {transform_indices = @transform_1, window_bounds = array<i64: 8, 128>}, {transform_indices = @transform_2, window_bounds = array<i64: 1, 1>}]} {
    %c0_i32 = arith.constant 0 : i32
    %0 = arith.cmpi eq, %arg0, %c0_i32 : i32
    %1 = arith.extui %0 : i1 to i32
    %c0_i32_0 = arith.constant 0 : i32
    %2 = arith.cmpi ne, %1, %c0_i32_0 : i32
    scf.if %2 {
      %cst_27 = arith.constant 0.000000e+00 : f32
      %105 = vector.broadcast %cst_27 : f32 to vector<1x128xf32>
      %c0_28 = arith.constant 0 : index
      %c0_29 = arith.constant 0 : index
      %106 = vector.load %arg4[%c0_28, %c0_29] : memref<1x128xf32, #tpu.memory_space<vmem>>, vector<1x128xf32>
      tpu.vector_store %arg4[%c0_28, %c0_29], %105 {strides = array<i32>} : memref<1x128xf32, #tpu.memory_space<vmem>>, vector<1x128xf32>,
    } else {
    }
    %c0_i32_1 = arith.constant 0 : i32
    %c128_i32 = arith.constant 128 : i32
    %3 = arith.muli %c0_i32_1, %c128_i32 : i32
    %4 = tpu.assume_multiple %3, 128 : i32
    %c0 = arith.constant 0 : index
    %5 = arith.index_cast %4 : i32 to index
    %6 = vector.load %arg1[%c0, %5] : memref<8x128xf32, #tpu.memory_space<vmem>>, vector<8x128xf32>
    %c0_2 = arith.constant 0 : index
    %7 = arith.index_cast %4 : i32 to index
    %8 = vector.load %arg2[%c0_2, %7] : memref<8x128xf32, #tpu.memory_space<vmem>>, vector<8x128xf32>
    %9 = arith.subf %6, %8 : vector<8x128xf32>
    %10 = arith.mulf %9, %9 : vector<8x128xf32>
    %11 = vector.extract_strided_slice %10 {offsets = [0, 0], sizes = [1, 128], strides = [1, 1]} : vector<8x128xf32> to vector<1x128xf32>
    %c1 = arith.constant 1 : index
    %12 = arith.index_cast %4 : i32 to index
    %13 = vector.load %arg1[%c1, %12] : memref<8x128xf32, #tpu.memory_space<vmem>>, vector<1x128xf32>
    %c1_3 = arith.constant 1 : index
    %14 = arith.index_cast %4 : i32 to index
    %15 = vector.load %arg2[%c1_3, %14] : memref<8x128xf32, #tpu.memory_space<vmem>>, vector<1x128xf32>
    %cst = arith.constant 0.000000e+00 : f32
    %16 = vector.broadcast %cst : f32 to vector<1x128xf32>
    %17 = arith.cmpf ogt, %15, %16 : vector<1x128xf32>
    %18 = arith.extui %17 : vector<1x128xi1> to vector<1x128xi32>
    %19 = arith.sitofp %18 : vector<1x128xi32> to vector<1x128xf32>
    %20 = vector.extract_strided_slice %9 {offsets = [0, 0], sizes = [1, 128], strides = [1, 1]} : vector<8x128xf32> to vector<1x128xf32>
    %21 = math.absf %20 : vector<1x128xf32>
    %cst_4 = arith.constant 1.000000e+00 : f32
    %22 = vector.broadcast %cst_4 : f32 to vector<1x128xf32>
    %23 = arith.subf %22, %21 : vector<1x128xf32>
    %24 = arith.subf %13, %23 : vector<1x128xf32>
    %25 = arith.mulf %24, %24 : vector<1x128xf32>
    %cst_5 = arith.constant 1.000000e+00 : f32
    %26 = vector.broadcast %cst_5 : f32 to vector<1x128xf32>
    %27 = arith.subf %26, %19 : vector<1x128xf32>
    %cst_6 = arith.constant 5.000000e-01 : f32
    %28 = vector.broadcast %cst_6 : f32 to vector<1x128xf32>
    %29 = arith.mulf %28, %27 : vector<1x128xf32>
    %30 = arith.mulf %13, %13 : vector<1x128xf32>
    %31 = arith.mulf %29, %30 : vector<1x128xf32>
    %32 = vector.extract_strided_slice %10 {offsets = [2, 0], sizes = [6, 128], strides = [1, 1]} : vector<8x128xf32> to vector<6x128xf32>
    %cst_7 = arith.constant dense<0.000000e+00> : vector<128xf32>
    %33 = vector.multi_reduction <add>, %32, %cst_7 [0] : vector<6x128xf32> to vector<128xf32>
    %34 = vector.shape_cast %33 : vector<128xf32> to vector<1x128xf32>
    %c2 = arith.constant 2 : index
    %35 = arith.index_cast %4 : i32 to index
    %36 = vector.load %arg2[%c2, %35] : memref<8x128xf32, #tpu.memory_space<vmem>>, vector<1x128xf32>
    %37 = vector.extract_strided_slice %10 {offsets = [3, 0], sizes = [1, 128], strides = [1, 1]} : vector<8x128xf32> to vector<1x128xf32>
    %38 = arith.mulf %36, %37 : vector<1x128xf32>
    %cst_8 = arith.constant -0.199999988 : f32
    %39 = vector.broadcast %cst_8 : f32 to vector<1x128xf32>
    %40 = arith.mulf %39, %38 : vector<1x128xf32>
    %41 = arith.addf %34, %40 : vector<1x128xf32>
    %c2_9 = arith.constant 2 : index
    %42 = arith.index_cast %4 : i32 to index
    %43 = vector.load %arg2[%c2_9, %42] : memref<8x128xf32, #tpu.memory_space<vmem>>, vector<1x128xf32>
    %44 = vector.extract_strided_slice %10 {offsets = [4, 0], sizes = [1, 128], strides = [1, 1]} : vector<8x128xf32> to vector<1x128xf32>
    %45 = arith.mulf %43, %44 : vector<1x128xf32>
    %cst_10 = arith.constant -0.399999976 : f32
    %46 = vector.broadcast %cst_10 : f32 to vector<1x128xf32>
    %47 = arith.mulf %46, %45 : vector<1x128xf32>
    %48 = arith.addf %41, %47 : vector<1x128xf32>
    %c3 = arith.constant 3 : index
    %49 = arith.index_cast %4 : i32 to index
    %50 = vector.load %arg2[%c3, %49] : memref<8x128xf32, #tpu.memory_space<vmem>>, vector<1x128xf32>
    %51 = vector.extract_strided_slice %10 {offsets = [2, 0], sizes = [1, 128], strides = [1, 1]} : vector<8x128xf32> to vector<1x128xf32>
    %52 = arith.mulf %50, %51 : vector<1x128xf32>
    %cst_11 = arith.constant -0.199999988 : f32
    %53 = vector.broadcast %cst_11 : f32 to vector<1x128xf32>
    %54 = arith.mulf %53, %52 : vector<1x128xf32>
    %55 = arith.addf %48, %54 : vector<1x128xf32>
    %c3_12 = arith.constant 3 : index
    %56 = arith.index_cast %4 : i32 to index
    %57 = vector.load %arg2[%c3_12, %56] : memref<8x128xf32, #tpu.memory_space<vmem>>, vector<1x128xf32>
    %58 = vector.extract_strided_slice %10 {offsets = [4, 0], sizes = [1, 128], strides = [1, 1]} : vector<8x128xf32> to vector<1x128xf32>
    %59 = arith.mulf %57, %58 : vector<1x128xf32>
    %cst_13 = arith.constant -3.000000e-01 : f32
    %60 = vector.broadcast %cst_13 : f32 to vector<1x128xf32>
    %61 = arith.mulf %60, %59 : vector<1x128xf32>
    %62 = arith.addf %55, %61 : vector<1x128xf32>
    %c4 = arith.constant 4 : index
    %63 = arith.index_cast %4 : i32 to index
    %64 = vector.load %arg2[%c4, %63] : memref<8x128xf32, #tpu.memory_space<vmem>>, vector<1x128xf32>
    %65 = vector.extract_strided_slice %10 {offsets = [2, 0], sizes = [1, 128], strides = [1, 1]} : vector<8x128xf32> to vector<1x128xf32>
    %66 = arith.mulf %64, %65 : vector<1x128xf32>
    %cst_14 = arith.constant -0.399999976 : f32
    %67 = vector.broadcast %cst_14 : f32 to vector<1x128xf32>
    %68 = arith.mulf %67, %66 : vector<1x128xf32>
    %69 = arith.addf %62, %68 : vector<1x128xf32>
    %c4_15 = arith.constant 4 : index
    %70 = arith.index_cast %4 : i32 to index
    %71 = vector.load %arg2[%c4_15, %70] : memref<8x128xf32, #tpu.memory_space<vmem>>, vector<1x128xf32>
    %72 = vector.extract_strided_slice %10 {offsets = [3, 0], sizes = [1, 128], strides = [1, 1]} : vector<8x128xf32> to vector<1x128xf32>
    %73 = arith.mulf %71, %72 : vector<1x128xf32>
    %cst_16 = arith.constant -3.000000e-01 : f32
    %74 = vector.broadcast %cst_16 : f32 to vector<1x128xf32>
    %75 = arith.mulf %74, %73 : vector<1x128xf32>
    %76 = arith.addf %69, %75 : vector<1x128xf32>
    %c5 = arith.constant 5 : index
    %77 = arith.index_cast %4 : i32 to index
    %78 = vector.load %arg2[%c5, %77] : memref<8x128xf32, #tpu.memory_space<vmem>>, vector<1x128xf32>
    %79 = vector.extract_strided_slice %10 {offsets = [6, 0], sizes = [1, 128], strides = [1, 1]} : vector<8x128xf32> to vector<1x128xf32>
    %80 = arith.mulf %78, %79 : vector<1x128xf32>
    %cst_17 = arith.constant -0.100000024 : f32
    %81 = vector.broadcast %cst_17 : f32 to vector<1x128xf32>
    %82 = arith.mulf %81, %80 : vector<1x128xf32>
    %83 = arith.addf %76, %82 : vector<1x128xf32>
    %c6 = arith.constant 6 : index
    %84 = arith.index_cast %4 : i32 to index
    %85 = vector.load %arg2[%c6, %84] : memref<8x128xf32, #tpu.memory_space<vmem>>, vector<1x128xf32>
    %86 = vector.extract_strided_slice %10 {offsets = [5, 0], sizes = [1, 128], strides = [1, 1]} : vector<8x128xf32> to vector<1x128xf32>
    %87 = arith.mulf %85, %86 : vector<1x128xf32>
    %cst_18 = arith.constant -0.100000024 : f32
    %88 = vector.broadcast %cst_18 : f32 to vector<1x128xf32>
    %89 = arith.mulf %88, %87 : vector<1x128xf32>
    %90 = arith.addf %83, %89 : vector<1x128xf32>
    %cst_19 = arith.constant 5.000000e+00 : f32
    %91 = vector.broadcast %cst_19 : f32 to vector<1x128xf32>
    %92 = arith.mulf %91, %11 : vector<1x128xf32>
    %93 = arith.addf %92, %25 : vector<1x128xf32>
    %cst_20 = arith.constant 1.000000e+00 : f32
    %94 = vector.broadcast %cst_20 : f32 to vector<1x128xf32>
    %95 = arith.mulf %94, %90 : vector<1x128xf32>
    %96 = arith.addf %93, %95 : vector<1x128xf32>
    %97 = arith.mulf %19, %96 : vector<1x128xf32>
    %98 = arith.addf %97, %31 : vector<1x128xf32>
    %c0_21 = arith.constant 0 : index
    %c0_22 = arith.constant 0 : index
    %99 = vector.load %arg4[%c0_21, %c0_22] : memref<1x128xf32, #tpu.memory_space<vmem>>, vector<1x128xf32>
    %100 = arith.addf %99, %98 : vector<1x128xf32>
    %c0_23 = arith.constant 0 : index
    %c0_24 = arith.constant 0 : index
    %101 = vector.load %arg4[%c0_23, %c0_24] : memref<1x128xf32, #tpu.memory_space<vmem>>, vector<1x128xf32>
    tpu.vector_store %arg4[%c0_23, %c0_24], %100 {strides = array<i32>} : memref<1x128xf32, #tpu.memory_space<vmem>>, vector<1x128xf32>,
    %c1_i32 = arith.constant 1 : i32
    %c0_i32_25 = arith.constant 0 : i32
    %102 = arith.cmpi eq, %arg0, %c0_i32_25 : i32
    %103 = arith.extui %102 : i1 to i32
    %c0_i32_26 = arith.constant 0 : i32
    %104 = arith.cmpi ne, %103, %c0_i32_26 : i32
    scf.if %104 {
      %c0_27 = arith.constant 0 : index
      %c0_28 = arith.constant 0 : index
      %105 = vector.load %arg4[%c0_27, %c0_28] : memref<1x128xf32, #tpu.memory_space<vmem>>, vector<1x128xf32>
      %106 = vector.shape_cast %105 : vector<1x128xf32> to vector<1x1x128xf32>
      %cst_29 = arith.constant dense<0.000000e+00> : vector<1xf32>
      %107 = vector.multi_reduction <add>, %106, %cst_29 [1, 2] : vector<1x1x128xf32> to vector<1xf32>
      %108 = vector.shape_cast %107 : vector<1xf32> to vector<1x1x1xf32>
      %109 = vector.extract %108[0, 0, 0] : f32 from vector<1x1x1xf32>
      %c0_30 = arith.constant 0 : index
      %c0_31 = arith.constant 0 : index
      %110 = memref.load %arg3[%c0_30, %c0_31] : memref<1x1xf32, #tpu.memory_space<smem>>
      memref.store %109, %arg3[%c0_30, %c0_31] : memref<1x1xf32, #tpu.memory_space<smem>>
    } else {
    }
    return
  }
  func.func @transform_0(%arg0: i32) -> (i32, i32) {
    %c0_i32 = arith.constant 0 : i32
    %c0_i32_0 = arith.constant 0 : i32
    return %c0_i32, %arg0 : i32, i32
  }
  func.func @transform_1(%arg0: i32) -> (i32, i32) {
    %c0_i32 = arith.constant 0 : i32
    %c0_i32_0 = arith.constant 0 : i32
    return %c0_i32, %arg0 : i32, i32
  }
  func.func @transform_2(%arg0: i32) -> (i32, i32) {
    %c0_i32 = arith.constant 0 : i32
    %c0_i32_0 = arith.constant 0 : i32
    %c0_i32_1 = arith.constant 0 : i32
    return %c0_i32, %c0_i32_0 : i32, i32
  }
}

</mosaic_0001>

<llo_original>
// kernel: tpu_custom_call.1
$region0: #{tpu_custom_call.1}
  #allocation0 [shape = 'u32[]', space=smem, size = 0x4, offset = 0x4, fixed_abs, tag = 'smem constant byte address 0x4 - core index']
  #allocation1 [shape = 'u32[144,128]{1,0:T(1,128)}', space=vmem, size = 0x12000, scoped, tag = 'internal scratch']
  #allocation2 [shape = 'f32[1,128]{1,0:T(1,128)}', space=vmem, size = 0x200, scoped, tag = 'scratch operand']
  %s0 = inlined_call_operand.hbm [shape: f32[8,128], index: 0, kind: input, shape index: {}]
  %s1 = inlined_call_operand.hbm [shape: f32[8,128], index: 1, kind: input, shape index: {}]
  %s2 = inlined_call_operand.hbm [shape: f32[1,1], index: 2, kind: output, shape index: {}]
  %s3 = sld [smem:[#allocation0]]
  $region34: #{tpu_custom_call.1} parent=0
    _
  %s5 = ssub.s32 1, %s3
  %s6 = scalar_select 0, %s5, %s3
  $region1: #{tpu_custom_call.1} parent=0
    #allocation3 [shape = 'u8[4096]{0}', space=vmem, size = 0x1000, scoped, tag = 'input window, operand 0, single buffered']
    #allocation4 [shape = 's32[1]{0}', space=sflag, size = 0x4, scoped, tag = 'scoped memory for tpu_custom_call.1']
    #allocation5 [shape = 's32[1]{0}', space=sflag, size = 0x4, scoped, tag = 'scoped memory for tpu_custom_call.1']
    #allocation6 [shape = 'u8[4096]{0}', space=vmem, size = 0x1000, scoped, tag = 'input window, operand 1, single buffered']
    #allocation7 [shape = 's32[1]{0}', space=sflag, size = 0x4, scoped, tag = 'scoped memory for tpu_custom_call.1']
    #allocation8 [shape = 'u8[512]{0}', space=smem, size = 0x200, scoped, tag = 'output window, operand 0, single buffered']
    %7 = vsyncpa [#allocation4], 0
    %8 = vsyncpa [#allocation7], 0
    %9 = vsyncpa [#allocation5], 0
    // Predicated region
    $region2: #{tpu_custom_call.1} parent=1 // pred_check
      _
    $region3: #{tpu_custom_call.1} parent=1 // pred_check_branch
      %11 = sbr.rel (0) target = $region5
    $region4: #{tpu_custom_call.1} parent=1 // pred_region
      %s13 = ssub.s32 128, 128
      %14 = vsyncadd [#allocation4], %s13
      %s16 = sshll.u32 [#allocation3], 4
      %s17 = int_to_ptr.vmem [resolvable:$true] %s16
      %19 = dma.hbm_to_vmem [thread:$0]  %s0, 128, %s17, [#allocation4]
    $region5: #{tpu_custom_call.1} parent=1 // pred_fallthru
      _
    // Predicated region
    $region6: #{tpu_custom_call.1} parent=1 // pred_check
      _
    $region7: #{tpu_custom_call.1} parent=1 // pred_check_branch
      %21 = sbr.rel (0) target = $region9
    $region8: #{tpu_custom_call.1} parent=1 // pred_region
      %s23 = ssub.s32 128, 128
      %24 = vsyncadd [#allocation7], %s23
      %s26 = sshll.u32 [#allocation6], 4
      %s27 = int_to_ptr.vmem [resolvable:$true] %s26
      %29 = dma.hbm_to_vmem [thread:$0]  %s1, 128, %s27, [#allocation7]
    $region9: #{tpu_custom_call.1} parent=1 // pred_fallthru
      _
    // Predicated region
    $region10: #{tpu_custom_call.1} parent=1 // pred_check
      _
    $region11: #{tpu_custom_call.1} parent=1 // pred_check_branch
      %31 = sbr.rel (0) target = $region13
    $region12: #{tpu_custom_call.1} parent=1 // pred_region
      %32 = dma.done [#allocation4], 128
    $region13: #{tpu_custom_call.1} parent=1 // pred_fallthru
      _
    // Predicated region
    $region14: #{tpu_custom_call.1} parent=1 // pred_check
      _
    $region15: #{tpu_custom_call.1} parent=1 // pred_check_branch
      %34 = sbr.rel (0) target = $region17
    $region16: #{tpu_custom_call.1} parent=1 // pred_region
      %35 = dma.done [#allocation7], 128
    $region17: #{tpu_custom_call.1} parent=1 // pred_fallthru
      _
    %p36 = scmp.eq.s32.totalorder 0, 0
    // Predicated region
    $region18: #{tpu_custom_call.1} parent=1 // pred_check
      %p37 = pneg %p36
    $region19: #{tpu_custom_call.1} parent=1 // pred_check_branch
      %39 = sbr.rel (%p37) target = $region21
    $region20: #{tpu_custom_call.1} parent=1 // pred_region
      %40 = vst [vmem:[#allocation2] sm:$0x1] 0.0
    $region21: #{tpu_custom_call.1} parent=1 // pred_fallthru
      _
    %v41 = vld [vmem:[#allocation3] sm:$0xff]
    %v42 = vld [vmem:[#allocation6] sm:$0xff]
    %v43 = vsub.f32 %v41, %v42
    %v44 = vmul.f32 %v43, %v43
    %v45 = vld [vmem:[#allocation3 + $0x1] sm:$0x1]
    %v46 = vld [vmem:[#allocation6 + $0x1] sm:$0x1]
    %vm47 = vcmp.gt.f32.partialorder %v46, 0.0
    %v48 = vsel %vm47, 1, 0
    %v49 = vcvt.s32.f32 %v48
    %v50 = vand.u32 2147483647, %v43
    %v51 = vsub.f32 1.0, %v50
    %v52 = vsub.f32 %v45, %v51
    %v53 = vmul.f32 %v52, %v52
    %v54 = vsub.f32 1.0, %v49
    %v55 = vmul.f32 %v54, 0.5
    %v56 = vmul.f32 %v45, %v45
    %v57 = vmul.f32 %v55, %v56
    %v59 = vrot.slane %v44, 2
    %vm61 = vcmask 1045504
    %v62 = vsel %vm61, %v59, 0.0
    %v63 = vrot.slane %v62, 4
    %v64 = vadd.f32 %v62, %v63
    %v65 = vrot.slane %v64, 2
    %v66 = vadd.f32 %v64, %v65
    %v67 = vrot.slane %v66, 1
    %v68 = vadd.f32 %v66, %v67
    %v69 = vld [vmem:[#allocation6 + $0x2] sm:$0x1]
    %v70 = vrot.slane %v44, 3
    %v72 = vmul.f32 %v69, %v70
    %v73 = vmul.f32 %v72, -0.19999999
    %v74 = vadd.f32 %v68, %v73
    %v75 = vrot.slane %v44, 4
    %v77 = vmul.f32 %v69, %v75
    %v78 = vmul.f32 %v77, -0.39999998
    %v79 = vadd.f32 %v74, %v78
    %v80 = vld [vmem:[#allocation6 + $0x3] sm:$0x1]
    %v81 = vmul.f32 %v80, %v59
    %v82 = vmul.f32 %v81, -0.19999999
    %v83 = vadd.f32 %v79, %v82
    %v84 = vmul.f32 %v80, %v75
    %v85 = vmul.f32 %v84, -0.3
    %v86 = vadd.f32 %v83, %v85
    %v87 = vld [vmem:[#allocation6 + $0x4] sm:$0x1]
    %v88 = vmul.f32 %v87, %v59
    %v89 = vmul.f32 %v88, -0.39999998
    %v90 = vadd.f32 %v86, %v89
    %v91 = vmul.f32 %v87, %v70
    %v92 = vmul.f32 %v91, -0.3
    %v93 = vadd.f32 %v90, %v92
    %v94 = vld [vmem:[#allocation6 + $0x5] sm:$0x1]
    %v95 = vrot.slane %v44, 6
    %v97 = vmul.f32 %v94, %v95
    %v98 = vmul.f32 %v97, -0.100000024
    %v99 = vadd.f32 %v93, %v98
    %v100 = vld [vmem:[#allocation6 + $0x6] sm:$0x1]
    %v101 = vrot.slane %v44, 5
    %v103 = vmul.f32 %v100, %v101
    %v104 = vmul.f32 %v103, -0.100000024
    %v105 = vadd.f32 %v99, %v104
    %v106 = vmul.f32 %v44, 5.0
    %v107 = vadd.f32 %v106, %v53
    %v108 = vadd.f32 %v107, %v105
    %v109 = vmul.f32 %v49, %v108
    %v110 = vadd.f32 %v109, %v57
    %v111 = vld [vmem:[#allocation2] sm:$0x1]
    %v112 = vadd.f32 %v111, %v110
    %113 = vst [vmem:[#allocation2] sm:$0x1] %v112
    // Predicated region
    $region22: #{tpu_custom_call.1} parent=1 // pred_check
      %p114 = pneg %p36
    $region23: #{tpu_custom_call.1} parent=1 // pred_check_branch
      %116 = sbr.rel (%p114) target = $region25
    $region24: #{tpu_custom_call.1} parent=1 // pred_region
      %v117 = vld [vmem:[#allocation2] sm:$0x1]
      %vm118 = vcmask 1040384
      %v119 = vsel %vm118, %v117, 0.0
      %120 = vadd.xlane.f32.xlu0 %v119
      %v121 = vpop.xlane.xlu0 %120
      %v122 = vrot.slane %v121, 4
      %v123 = vadd.f32 %v121, %v122
      %v124 = vrot.slane %v123, 2
      %v125 = vadd.f32 %v123, %v124
      %v126 = vrot.slane %v125, 1
      %v127 = vadd.f32 %v125, %v126
      %s128 = vtos %v127
      %s129 = scalar_lea.smem [#allocation8], 0
      %130 = sst [smem:[%s129]] %s128
    $region25: #{tpu_custom_call.1} parent=1 // pred_fallthru
      _
    // Predicated region
    $region26: #{tpu_custom_call.1} parent=1 // pred_check
      _
    $region27: #{tpu_custom_call.1} parent=1 // pred_check_branch
      %132 = sbr.rel (0) target = $region29
    $region28: #{tpu_custom_call.1} parent=1 // pred_region
      %s134 = ssub.s32 16, 16
      %135 = vsyncadd [#allocation5], %s134
      %138 = dma.smem_to_hbm [#allocation8], 16, %s2, [#allocation5]
    $region29: #{tpu_custom_call.1} parent=1 // pred_fallthru
      _
    // Predicated region
    $region30: #{tpu_custom_call.1} parent=1 // pred_check
      _
    $region31: #{tpu_custom_call.1} parent=1 // pred_check_branch
      %140 = sbr.rel (0) target = $region33
    $region32: #{tpu_custom_call.1} parent=1 // pred_region
      %141 = dma.done [#allocation5], 16
    $region33: #{tpu_custom_call.1} parent=1 // pred_fallthru
      _
    %142 = sfence
    %143 = vsyncpa [#allocation4], 1
    %144 = vsyncpa [#allocation7], 1
    %145 = vsyncpa [#allocation5], 1

</llo_original>
